<compile_context>
chip_gen: v6e
topology: v6e:2x2x1
jax: 0.10.0
libtpu: 0.0.40
codegen_flags: <defaults>
</compile_context>

<pallas_src>
import jax
import jax.numpy as jnp
import numpy as np
from jax.experimental import pallas as pl
from jax.experimental.pallas import tpu as pltpu


# ----------------------------- Pallas kernel --------------------------------

def _cfg_denoiser_kernel(sigma_ref, scale_ref, x_ref, uncond_ref, cond_ref,
                         w_ref, v_ref, b_ref, o_ref):
    """Fully fused CFG denoiser.  Runs once (no grid); whole batch in VMEM.

    sigma_ref:  (B,)        SMEM
    scale_ref:  (1,)        SMEM   cond_scale
    x_ref:      (B, C, HW)  VMEM
    uncond_ref: (B, T, D)   VMEM
    cond_ref:   (B, T, D)   VMEM
    w_ref:      (C, C)      VMEM   channel-mixing (1x1 conv) weights
    v_ref:      (C, D)      VMEM   conditioning projection
    b_ref:      (C, 1)      VMEM   per-channel bias
    o_ref:      (B, C, HW)  VMEM   CFG-combined output
    """
    scale = scale_ref[0]
    w = w_ref[...]
    v = v_ref[...]
    bias = b_ref[...]

    num_samples = x_ref.shape[0]          # static; small (B = 2) -> unrolled
    for b in range(num_samples):
        # --- scalar path: k-diffusion input preconditioning ------------------
        sig = sigma_ref[b]
        c_in = 1.0 / jnp.sqrt(sig * sig + 1.0)

        # --- conditioning path: fold CFG combine into one projection ---------
        mu_u = jnp.mean(uncond_ref[b], axis=0, keepdims=True)   # (1, D)
        mu_c = jnp.mean(cond_ref[b], axis=0, keepdims=True)     # (1, D)
        mix = mu_u + (mu_c - mu_u) * scale                      # (1, D)
        proj = jnp.sum(v * mix, axis=1, keepdims=True)          # (C, 1)

        # --- image path: shared between uncond/cond branches -----------------
        x = x_ref[b]                                            # (C, HW)
        f = jnp.dot(w, x * c_in,
                    preferred_element_type=jnp.float32)         # (C, HW) MXU

        o_ref[b] = (x + f + proj + bias).astype(o_ref.dtype)


# ------------------------------ JAX wrapper ----------------------------------

def cfg_denoiser(x, sigma, uncond, cond, cond_scale, W, V, bias):
    """Mirror of CFGDenoiser.forward, fused into a single Pallas call.

    x: (B, C, H, W), sigma: (B,), uncond/cond: (B, T, D), cond_scale: float.
    """
    B, C, H, Wd = x.shape
    HW = H * Wd
    T, D = uncond.shape[1], uncond.shape[2]

    x_flat = x.reshape(B, C, HW)
    scale_arr = jnp.asarray([cond_scale], dtype=jnp.float32)
    sigma = sigma.astype(jnp.float32)

    out = pl.pallas_call(
        _cfg_denoiser_kernel,
        out_shape=jax.ShapeDtypeStruct((B, C, HW), x.dtype),
        grid=(1,),
        in_specs=[
            pl.BlockSpec(memory_space=pltpu.MemorySpace.SMEM),     # sigma (B,)
            pl.BlockSpec(memory_space=pltpu.MemorySpace.SMEM),     # cond_scale (1,)
            pl.BlockSpec((B, C, HW), lambda i: (0, 0, 0)),         # x
            pl.BlockSpec((B, T, D), lambda i: (0, 0, 0)),          # uncond
            pl.BlockSpec((B, T, D), lambda i: (0, 0, 0)),          # cond
            pl.BlockSpec((C, C), lambda i: (0, 0)),                # W
            pl.BlockSpec((C, D), lambda i: (0, 0)),                # V
            pl.BlockSpec((C, 1), lambda i: (0, 0)),                # bias
        ],
        out_specs=pl.BlockSpec((B, C, HW), lambda i: (0, 0, 0)),
    )(sigma, scale_arr, x_flat, uncond, cond, W, V, bias)
    return out.reshape(B, C, H, Wd)


# ------------------------------ pure-JAX reference ---------------------------
# Literal translation of the PyTorch module (cat -> inner model -> chunk -> CFG).

def _inner_model_ref(x, sigma, cond, W, V, bias):
    B2, C, H, Wd = x.shape
    c_in = 1.0 / jnp.sqrt(sigma * sigma + 1.0)
    h = x * c_in[:, None, None, None]
    cond_mean = cond.mean(axis=1)                    # (B2, D)
    proj = cond_mean @ V.T                           # (B2, C)
    f = jnp.einsum("oc,bchw->bohw", W, h)
    f = f + proj[:, :, None, None] + bias.reshape(1, C, 1, 1)
    return x + f


def _cfg_ref(x, sigma, uncond, cond, cond_scale, W, V, bias):
    x_in = jnp.concatenate([x, x], axis=0)
    sigma_in = jnp.concatenate([sigma, sigma], axis=0)
    cond_in = jnp.concatenate([uncond, cond], axis=0)
    den = _inner_model_ref(x_in, sigma_in, cond_in, W, V, bias)
    B = x.shape[0]
    uc, c = den[:B], den[B:]
    return uc + (c - uc) * cond_scale


# ----------------------------------- main ------------------------------------

if __name__ == "__main__":
    key = jax.random.PRNGKey(0)
    kx, ks, ku, kc, kw, kv, kb = jax.random.split(key, 7)

    B, C, H, Wd = 2, 4, 16, 16     # latent image, NCHW
    T, D = 8, 32                   # conditioning tokens / embed dim

    x = jax.random.normal(kx, (B, C, H, Wd), jnp.float32)
    sigma = jax.random.uniform(ks, (B,), jnp.float32, minval=0.1, maxval=2.0)
    uncond = jax.random.normal(ku, (B, T, D), jnp.float32)
    cond = jax.random.normal(kc, (B, T, D), jnp.float32)
    cond_scale = 7.5

    # Deterministic synthetic inner-model parameters.
    W = 0.1 * jax.random.normal(kw, (C, C), jnp.float32)
    V = 0.1 * jax.random.normal(kv, (C, D), jnp.float32)
    bias = 0.01 * jax.random.normal(kb, (C, 1), jnp.float32)

    out = cfg_denoiser(x, sigma, uncond, cond, cond_scale, W, V, bias)
    out = jax.block_until_ready(out)

    ref = _cfg_ref(x, sigma, uncond, cond, cond_scale, W, V, bias)
    np.testing.assert_allclose(np.asarray(out), np.asarray(ref),
                               rtol=1e-5, atol=5e-5)
    assert out.shape == (B, C, H, Wd)

    print("KERNEL_OK")
</pallas_src>

<mosaic_0001>
module attributes {stable_mosaic.version = 11 : i64} {
  func.func @_cfg_denoiser_kernel(%arg0: i32, %arg1: memref<2xf32, #tpu.memory_space<smem>>, %arg2: memref<1xf32, #tpu.memory_space<smem>>, %arg3: memref<2x4x256xf32, #tpu.memory_space<vmem>>, %arg4: memref<2x8x32xf32, #tpu.memory_space<vmem>>, %arg5: memref<2x8x32xf32, #tpu.memory_space<vmem>>, %arg6: memref<4x4xf32, #tpu.memory_space<vmem>>, %arg7: memref<4x32xf32, #tpu.memory_space<vmem>>, %arg8: memref<4x1xf32, #tpu.memory_space<vmem>>, %arg9: memref<2x4x256xf32, #tpu.memory_space<vmem>>) attributes {dimension_semantics = [#tpu.dimension_semantics<arbitrary>], iteration_bounds = array<i64: 1>, scalar_prefetch = 0 : i64, scratch_operands = 0 : i64, tpu.core_type = #tpu.core_type<tc>, window_params = [{transform_indices = @transform_0, window_bounds = array<i64: 2>}, {transform_indices = @transform_1, window_bounds = array<i64: 1>}, {pipeline_mode = #tpu.pipeline_mode<synchronous>, transform_indices = @transform_2, window_bounds = array<i64: 2, 4, 256>}, {pipeline_mode = #tpu.pipeline_mode<synchronous>, transform_indices = @transform_3, window_bounds = array<i64: 2, 8, 32>}, {pipeline_mode = #tpu.pipeline_mode<synchronous>, transform_indices = @transform_4, window_bounds = array<i64: 2, 8, 32>}, {pipeline_mode = #tpu.pipeline_mode<synchronous>, transform_indices = @transform_5, window_bounds = array<i64: 4, 4>}, {pipeline_mode = #tpu.pipeline_mode<synchronous>, transform_indices = @transform_6, window_bounds = array<i64: 4, 32>}, {pipeline_mode = #tpu.pipeline_mode<synchronous>, transform_indices = @transform_7, window_bounds = array<i64: 4, 1>}, {pipeline_mode = #tpu.pipeline_mode<synchronous>, transform_indices = @transform_8, window_bounds = array<i64: 2, 4, 256>}]} {
    %c0 = arith.constant 0 : index
    %0 = memref.load %arg2[%c0] : memref<1xf32, #tpu.memory_space<smem>>
    %c0_0 = arith.constant 0 : index
    %c0_1 = arith.constant 0 : index
    %1 = vector.load %arg6[%c0_0, %c0_1] : memref<4x4xf32, #tpu.memory_space<vmem>>, vector<4x4xf32>
    %c0_2 = arith.constant 0 : index
    %c0_3 = arith.constant 0 : index
    %2 = vector.load %arg7[%c0_2, %c0_3] : memref<4x32xf32, #tpu.memory_space<vmem>>, vector<4x32xf32>
    %c0_4 = arith.constant 0 : index
    %c0_5 = arith.constant 0 : index
    %3 = vector.load %arg8[%c0_4, %c0_5] : memref<4x1xf32, #tpu.memory_space<vmem>>, vector<4x1xf32>
    %c0_6 = arith.constant 0 : index
    %4 = memref.load %arg1[%c0_6] : memref<2xf32, #tpu.memory_space<smem>>
    %5 = arith.mulf %4, %4 : f32
    %cst = arith.constant 1.000000e+00 : f32
    %6 = arith.addf %5, %cst : f32
    %7 = math.sqrt %6 : f32
    %cst_7 = arith.constant 1.000000e+00 : f32
    %8 = arith.divf %cst_7, %7 : f32
    %c0_8 = arith.constant 0 : index
    %c0_9 = arith.constant 0 : index
    %c0_10 = arith.constant 0 : index
    %9 = vector.load %arg4[%c0_8, %c0_9, %c0_10] : memref<2x8x32xf32, #tpu.memory_space<vmem>>, vector<1x8x32xf32>
    %10 = vector.shape_cast %9 : vector<1x8x32xf32> to vector<8x32xf32>
    %cst_11 = arith.constant dense<0.000000e+00> : vector<32xf32>
    %11 = vector.multi_reduction <add>, %10, %cst_11 [0] : vector<8x32xf32> to vector<32xf32>
    %12 = vector.shape_cast %11 : vector<32xf32> to vector<1x32xf32>
    %cst_12 = arith.constant 8.000000e+00 : f32
    %13 = vector.broadcast %cst_12 : f32 to vector<1x32xf32>
    %14 = arith.divf %12, %13 : vector<1x32xf32>
    %c0_13 = arith.constant 0 : index
    %c0_14 = arith.constant 0 : index
    %c0_15 = arith.constant 0 : index
    %15 = vector.load %arg5[%c0_13, %c0_14, %c0_15] : memref<2x8x32xf32, #tpu.memory_space<vmem>>, vector<1x8x32xf32>
    %16 = vector.shape_cast %15 : vector<1x8x32xf32> to vector<8x32xf32>
    %cst_16 = arith.constant dense<0.000000e+00> : vector<32xf32>
    %17 = vector.multi_reduction <add>, %16, %cst_16 [0] : vector<8x32xf32> to vector<32xf32>
    %18 = vector.shape_cast %17 : vector<32xf32> to vector<1x32xf32>
    %cst_17 = arith.constant 8.000000e+00 : f32
    %19 = vector.broadcast %cst_17 : f32 to vector<1x32xf32>
    %20 = arith.divf %18, %19 : vector<1x32xf32>
    %21 = arith.subf %20, %14 : vector<1x32xf32>
    %22 = vector.broadcast %0 : f32 to vector<1x32xf32>
    %23 = arith.mulf %21, %22 : vector<1x32xf32>
    %24 = arith.addf %14, %23 : vector<1x32xf32>
    %25 = vector.broadcast %24 : vector<1x32xf32> to vector<4x32xf32>
    %26 = arith.mulf %2, %25 : vector<4x32xf32>
    %cst_18 = arith.constant dense<0.000000e+00> : vector<4xf32>
    %27 = vector.multi_reduction <add>, %26, %cst_18 [1] : vector<4x32xf32> to vector<4xf32>
    %28 = vector.shape_cast %27 : vector<4xf32> to vector<4x1xf32>
    %c0_19 = arith.constant 0 : index
    %c0_20 = arith.constant 0 : index
    %c0_21 = arith.constant 0 : index
    %29 = vector.load %arg3[%c0_19, %c0_20, %c0_21] : memref<2x4x256xf32, #tpu.memory_space<vmem>>, vector<1x4x256xf32>
    %30 = vector.shape_cast %29 : vector<1x4x256xf32> to vector<4x256xf32>
    %31 = vector.broadcast %8 : f32 to vector<4x256xf32>
    %32 = arith.mulf %30, %31 : vector<4x256xf32>
    %cst_22 = arith.constant dense<0.000000e+00> : vector<4x256xf32>
    %33 = tpu.matmul %1, %32, %cst_22 {dimension_numbers = #tpu.dot_dimension_numbers<[1], [0], [0], [1], [0, 0, 1, 1], [], []>} : vector<4x4xf32>, vector<4x256xf32>, vector<4x256xf32> -> vector<4x256xf32>
    %34 = arith.addf %30, %33 : vector<4x256xf32>
    %35 = vector.broadcast %28 : vector<4x1xf32> to vector<4x256xf32>
    %36 = arith.addf %34, %35 : vector<4x256xf32>
    %37 = vector.broadcast %3 : vector<4x1xf32> to vector<4x256xf32>
    %38 = arith.addf %36, %37 : vector<4x256xf32>
    %c0_23 = arith.constant 0 : index
    %c0_24 = arith.constant 0 : index
    %c0_25 = arith.constant 0 : index
    %39 = vector.load %arg9[%c0_23, %c0_24, %c0_25] : memref<2x4x256xf32, #tpu.memory_space<vmem>>, vector<1x4x256xf32>
    %40 = vector.shape_cast %39 : vector<1x4x256xf32> to vector<4x256xf32>
    %41 = vector.shape_cast %38 : vector<4x256xf32> to vector<1x4x256xf32>
    tpu.vector_store %arg9[%c0_23, %c0_24, %c0_25], %41 {strides = array<i32>} : memref<2x4x256xf32, #tpu.memory_space<vmem>>, vector<1x4x256xf32>,
    %c1 = arith.constant 1 : index
    %42 = memref.load %arg1[%c1] : memref<2xf32, #tpu.memory_space<smem>>
    %43 = arith.mulf %42, %42 : f32
    %cst_26 = arith.constant 1.000000e+00 : f32
    %44 = arith.addf %43, %cst_26 : f32
    %45 = math.sqrt %44 : f32
    %cst_27 = arith.constant 1.000000e+00 : f32
    %46 = arith.divf %cst_27, %45 : f32
    %c1_28 = arith.constant 1 : index
    %c0_29 = arith.constant 0 : index
    %c0_30 = arith.constant 0 : index
    %47 = vector.load %arg4[%c1_28, %c0_29, %c0_30] : memref<2x8x32xf32, #tpu.memory_space<vmem>>, vector<1x8x32xf32>
    %48 = vector.shape_cast %47 : vector<1x8x32xf32> to vector<8x32xf32>
    %cst_31 = arith.constant dense<0.000000e+00> : vector<32xf32>
    %49 = vector.multi_reduction <add>, %48, %cst_31 [0] : vector<8x32xf32> to vector<32xf32>
    %50 = vector.shape_cast %49 : vector<32xf32> to vector<1x32xf32>
    %cst_32 = arith.constant 8.000000e+00 : f32
    %51 = vector.broadcast %cst_32 : f32 to vector<1x32xf32>
    %52 = arith.divf %50, %51 : vector<1x32xf32>
    %c1_33 = arith.constant 1 : index
    %c0_34 = arith.constant 0 : index
    %c0_35 = arith.constant 0 : index
    %53 = vector.load %arg5[%c1_33, %c0_34, %c0_35] : memref<2x8x32xf32, #tpu.memory_space<vmem>>, vector<1x8x32xf32>
    %54 = vector.shape_cast %53 : vector<1x8x32xf32> to vector<8x32xf32>
    %cst_36 = arith.constant dense<0.000000e+00> : vector<32xf32>
    %55 = vector.multi_reduction <add>, %54, %cst_36 [0] : vector<8x32xf32> to vector<32xf32>
    %56 = vector.shape_cast %55 : vector<32xf32> to vector<1x32xf32>
    %cst_37 = arith.constant 8.000000e+00 : f32
    %57 = vector.broadcast %cst_37 : f32 to vector<1x32xf32>
    %58 = arith.divf %56, %57 : vector<1x32xf32>
    %59 = arith.subf %58, %52 : vector<1x32xf32>
    %60 = vector.broadcast %0 : f32 to vector<1x32xf32>
    %61 = arith.mulf %59, %60 : vector<1x32xf32>
    %62 = arith.addf %52, %61 : vector<1x32xf32>
    %63 = vector.broadcast %62 : vector<1x32xf32> to vector<4x32xf32>
    %64 = arith.mulf %2, %63 : vector<4x32xf32>
    %cst_38 = arith.constant dense<0.000000e+00> : vector<4xf32>
    %65 = vector.multi_reduction <add>, %64, %cst_38 [1] : vector<4x32xf32> to vector<4xf32>
    %66 = vector.shape_cast %65 : vector<4xf32> to vector<4x1xf32>
    %c1_39 = arith.constant 1 : index
    %c0_40 = arith.constant 0 : index
    %c0_41 = arith.constant 0 : index
    %67 = vector.load %arg3[%c1_39, %c0_40, %c0_41] : memref<2x4x256xf32, #tpu.memory_space<vmem>>, vector<1x4x256xf32>
    %68 = vector.shape_cast %67 : vector<1x4x256xf32> to vector<4x256xf32>
    %69 = vector.broadcast %46 : f32 to vector<4x256xf32>
    %70 = arith.mulf %68, %69 : vector<4x256xf32>
    %cst_42 = arith.constant dense<0.000000e+00> : vector<4x256xf32>
    %71 = tpu.matmul %1, %70, %cst_42 {dimension_numbers = #tpu.dot_dimension_numbers<[1], [0], [0], [1], [0, 0, 1, 1], [], []>} : vector<4x4xf32>, vector<4x256xf32>, vector<4x256xf32> -> vector<4x256xf32>
    %72 = arith.addf %68, %71 : vector<4x256xf32>
    %73 = vector.broadcast %66 : vector<4x1xf32> to vector<4x256xf32>
    %74 = arith.addf %72, %73 : vector<4x256xf32>
    %75 = vector.broadcast %3 : vector<4x1xf32> to vector<4x256xf32>
    %76 = arith.addf %74, %75 : vector<4x256xf32>
    %c1_43 = arith.constant 1 : index
    %c0_44 = arith.constant 0 : index
    %c0_45 = arith.constant 0 : index
    %77 = vector.load %arg9[%c1_43, %c0_44, %c0_45] : memref<2x4x256xf32, #tpu.memory_space<vmem>>, vector<1x4x256xf32>
    %78 = vector.shape_cast %77 : vector<1x4x256xf32> to vector<4x256xf32>
    %79 = vector.shape_cast %76 : vector<4x256xf32> to vector<1x4x256xf32>
    tpu.vector_store %arg9[%c1_43, %c0_44, %c0_45], %79 {strides = array<i32>} : memref<2x4x256xf32, #tpu.memory_space<vmem>>, vector<1x4x256xf32>,
    return
  }
  func.func @transform_0(%arg0: i32) -> i32 {
    %c0_i32 = arith.constant 0 : i32
    %c0_i32_0 = arith.constant 0 : i32
    return %c0_i32 : i32
  }
  func.func @transform_1(%arg0: i32) -> i32 {
    %c0_i32 = arith.constant 0 : i32
    %c0_i32_0 = arith.constant 0 : i32
    return %c0_i32 : i32
  }
  func.func @transform_2(%arg0: i32) -> (i32, i32, i32) {
    %c0_i32 = arith.constant 0 : i32
    %c0_i32_0 = arith.constant 0 : i32
    %c0_i32_1 = arith.constant 0 : i32
    %c0_i32_2 = arith.constant 0 : i32
    return %c0_i32, %c0_i32_0, %c0_i32_1 : i32, i32, i32
  }
  func.func @transform_3(%arg0: i32) -> (i32, i32, i32) {
    %c0_i32 = arith.constant 0 : i32
    %c0_i32_0 = arith.constant 0 : i32
    %c0_i32_1 = arith.constant 0 : i32
    %c0_i32_2 = arith.constant 0 : i32
    return %c0_i32, %c0_i32_0, %c0_i32_1 : i32, i32, i32
  }
  func.func @transform_4(%arg0: i32) -> (i32, i32, i32) {
    %c0_i32 = arith.constant 0 : i32
    %c0_i32_0 = arith.constant 0 : i32
    %c0_i32_1 = arith.constant 0 : i32
    %c0_i32_2 = arith.constant 0 : i32
    return %c0_i32, %c0_i32_0, %c0_i32_1 : i32, i32, i32
  }
  func.func @transform_5(%arg0: i32) -> (i32, i32) {
    %c0_i32 = arith.constant 0 : i32
    %c0_i32_0 = arith.constant 0 : i32
    %c0_i32_1 = arith.constant 0 : i32
    return %c0_i32, %c0_i32_0 : i32, i32
  }
  func.func @transform_6(%arg0: i32) -> (i32, i32) {
    %c0_i32 = arith.constant 0 : i32
    %c0_i32_0 = arith.constant 0 : i32
    %c0_i32_1 = arith.constant 0 : i32
    return %c0_i32, %c0_i32_0 : i32, i32
  }
  func.func @transform_7(%arg0: i32) -> (i32, i32) {
    %c0_i32 = arith.constant 0 : i32
    %c0_i32_0 = arith.constant 0 : i32
    %c0_i32_1 = arith.constant 0 : i32
    return %c0_i32, %c0_i32_0 : i32, i32
  }
  func.func @transform_8(%arg0: i32) -> (i32, i32, i32) {
    %c0_i32 = arith.constant 0 : i32
    %c0_i32_0 = arith.constant 0 : i32
    %c0_i32_1 = arith.constant 0 : i32
    %c0_i32_2 = arith.constant 0 : i32
    return %c0_i32, %c0_i32_0, %c0_i32_1 : i32, i32, i32
  }
}

</mosaic_0001>

<llo_original>
// kernel: tpu_custom_call.1
$region0: #{tpu_custom_call.1}
  #allocation0 [shape = 'u32[]', space=smem, size = 0x4, offset = 0x4, fixed_abs, tag = 'smem constant byte address 0x4 - core index']
  #allocation1 [shape = 'u32[144,128]{1,0:T(1,128)}', space=vmem, size = 0x12000, scoped, tag = 'internal scratch']
  #allocation2 [shape = 'f32[1]{0:T(128)S(6)}', space=smem, size = 0x200, scoped, tag = 'scoped memory for tpu_custom_call.1']
  %s0 = inlined_call_operand.hbm [shape: f32[2], index: 0, kind: input, shape index: {}]
  %s1 = inlined_call_operand.<no memory space> [shape: f32[1], index: 1, kind: input, shape index: {}]
  %s2 = inlined_call_operand.hbm [shape: f32[2,4,256], index: 2, kind: input, shape index: {}]
  %s3 = inlined_call_operand.hbm [shape: f32[2,8,32], index: 3, kind: input, shape index: {}]
  %s4 = inlined_call_operand.hbm [shape: f32[2,8,32], index: 4, kind: input, shape index: {}]
  %s5 = inlined_call_operand.vmem [shape: f32[4,4], index: 5, kind: input, shape index: {}]
  %s6 = inlined_call_operand.vmem [shape: f32[4,32], index: 6, kind: input, shape index: {}]
  %s7 = inlined_call_operand.vmem [shape: f32[4,1], index: 7, kind: input, shape index: {}]
  %s8 = inlined_call_operand.hbm [shape: f32[2,4,256], index: 8, kind: output, shape index: {}]
  %s9 = sld [smem:[#allocation0]]
  $region58: #{tpu_custom_call.1} parent=0
    _
  %s11 = ssub.s32 1, %s9
  %s12 = scalar_select 0, %s11, %s9
  %13 = sst [smem:[#allocation2]] %s1
  $region1: #{tpu_custom_call.1} parent=0
    #allocation3 [shape = 'u8[512]{0}', space=smem, size = 0x200, scoped, tag = 'input window, operand 0, single buffered']
    #allocation4 [shape = 's32[1]{0}', space=sflag, size = 0x4, scoped, tag = 'scoped memory for tpu_custom_call.1']
    #allocation5 [shape = 's32[1]{0}', space=sflag, size = 0x4, scoped, tag = 'scoped memory for tpu_custom_call.1']
    #allocation6 [shape = 's32[1]{0}', space=sflag, size = 0x4, scoped, tag = 'scoped memory for tpu_custom_call.1']
    #allocation7 [shape = 'u8[8192]{0}', space=vmem, size = 0x2000, scoped, tag = 'input window, operand 2, single buffered']
    #allocation8 [shape = 'u8[8192]{0}', space=vmem, size = 0x2000, scoped, tag = 'input window, operand 3, single buffered']
    #allocation9 [shape = 's32[1]{0}', space=sflag, size = 0x4, scoped, tag = 'scoped memory for tpu_custom_call.1']
    #allocation10 [shape = 'u8[8192]{0}', space=vmem, size = 0x2000, scoped, tag = 'input window, operand 4, single buffered']
    #allocation11 [shape = 'u8[8192]{0}', space=vmem, size = 0x2000, scoped, tag = 'output window, operand 0, single buffered']
    %14 = vsyncpa [#allocation6], 0
    %15 = vsyncpa [#allocation4], 0
    %16 = vsyncpa [#allocation9], 0
    %17 = vsyncpa [#allocation5], 0
    // Predicated region
    $region2: #{tpu_custom_call.1} parent=1 // pred_check
      _
    $region3: #{tpu_custom_call.1} parent=1 // pred_check_branch
      %19 = sbr.rel (0) target = $region5
    $region4: #{tpu_custom_call.1} parent=1 // pred_region
      %s21 = ssub.s32 16, 16
      %22 = vsyncadd [#allocation6], %s21
      %25 = dma.hbm_to_smem %s0, 16, [#allocation3], [#allocation6]
    $region5: #{tpu_custom_call.1} parent=1 // pred_fallthru
      _
    // Predicated region
    $region6: #{tpu_custom_call.1} parent=1 // pred_check
      _
    $region7: #{tpu_custom_call.1} parent=1 // pred_check_branch
      %27 = sbr.rel (0) target = $region9
    $region8: #{tpu_custom_call.1} parent=1 // pred_region
      _
    $region9: #{tpu_custom_call.1} parent=1 // pred_fallthru
      _
    // Predicated region
    $region10: #{tpu_custom_call.1} parent=1 // pred_check
      _
    $region11: #{tpu_custom_call.1} parent=1 // pred_check_branch
      %29 = sbr.rel (0) target = $region13
    $region12: #{tpu_custom_call.1} parent=1 // pred_region
      %s31 = ssub.s32 256, 256
      %32 = vsyncadd [#allocation4], %s31
      %s33 = sshll.u32 [#allocation7], 4
      %s34 = int_to_ptr.vmem [resolvable:$true] %s33
      %39 = dma.hbm_to_vmem [thread:$0]  %s2, 256, %s34, [#allocation4], 128, 128, 8
    $region13: #{tpu_custom_call.1} parent=1 // pred_fallthru
      _
    // Predicated region
    $region14: #{tpu_custom_call.1} parent=1 // pred_check
      _
    $region15: #{tpu_custom_call.1} parent=1 // pred_check_branch
      %41 = sbr.rel (0) target = $region17
    $region16: #{tpu_custom_call.1} parent=1 // pred_region
      %s43 = ssub.s32 256, 256
      %44 = vsyncadd [#allocation9], %s43
      %s45 = sshll.u32 [#allocation8], 4
      %s46 = int_to_ptr.vmem [resolvable:$true] %s45
      %51 = dma.hbm_to_vmem [thread:$0]  %s3, 256, %s46, [#allocation9], 128, 128, 8
    $region17: #{tpu_custom_call.1} parent=1 // pred_fallthru
      _
    // Predicated region
    $region18: #{tpu_custom_call.1} parent=1 // pred_check
      _
    $region19: #{tpu_custom_call.1} parent=1 // pred_check_branch
      %53 = sbr.rel (0) target = $region21
    $region20: #{tpu_custom_call.1} parent=1 // pred_region
      %s55 = ssub.s32 256, 256
      %56 = vsyncadd [#allocation9], %s55
      %s57 = sshll.u32 [#allocation10], 4
      %s58 = int_to_ptr.vmem [resolvable:$true] %s57
      %63 = dma.hbm_to_vmem [thread:$0]  %s4, 256, %s58, [#allocation9], 128, 128, 8
    $region21: #{tpu_custom_call.1} parent=1 // pred_fallthru
      _
    // Predicated region
    $region22: #{tpu_custom_call.1} parent=1 // pred_check
      _
    $region23: #{tpu_custom_call.1} parent=1 // pred_check_branch
      %65 = sbr.rel (0) target = $region25
    $region24: #{tpu_custom_call.1} parent=1 // pred_region
      _
    $region25: #{tpu_custom_call.1} parent=1 // pred_fallthru
      _
    // Predicated region
    $region26: #{tpu_custom_call.1} parent=1 // pred_check
      _
    $region27: #{tpu_custom_call.1} parent=1 // pred_check_branch
      %67 = sbr.rel (0) target = $region29
    $region28: #{tpu_custom_call.1} parent=1 // pred_region
      _
    $region29: #{tpu_custom_call.1} parent=1 // pred_fallthru
      _
    // Predicated region
    $region30: #{tpu_custom_call.1} parent=1 // pred_check
      _
    $region31: #{tpu_custom_call.1} parent=1 // pred_check_branch
      %69 = sbr.rel (0) target = $region33
    $region32: #{tpu_custom_call.1} parent=1 // pred_region
      _
    $region33: #{tpu_custom_call.1} parent=1 // pred_fallthru
      _
    // Predicated region
    $region34: #{tpu_custom_call.1} parent=1 // pred_check
      _
    $region35: #{tpu_custom_call.1} parent=1 // pred_check_branch
      %71 = sbr.rel (0) target = $region37
    $region36: #{tpu_custom_call.1} parent=1 // pred_region
      %72 = dma.done [#allocation6], 16
    $region37: #{tpu_custom_call.1} parent=1 // pred_fallthru
      _
    // Predicated region
    $region38: #{tpu_custom_call.1} parent=1 // pred_check
      _
    $region39: #{tpu_custom_call.1} parent=1 // pred_check_branch
      %74 = sbr.rel (0) target = $region41
    $region40: #{tpu_custom_call.1} parent=1 // pred_region
      %75 = dma.done [#allocation4], 256
    $region41: #{tpu_custom_call.1} parent=1 // pred_fallthru
      _
    // Predicated region
    $region42: #{tpu_custom_call.1} parent=1 // pred_check
      _
    $region43: #{tpu_custom_call.1} parent=1 // pred_check_branch
      %77 = sbr.rel (0) target = $region45
    $region44: #{tpu_custom_call.1} parent=1 // pred_region
      %78 = dma.done [#allocation9], 256
    $region45: #{tpu_custom_call.1} parent=1 // pred_fallthru
      _
    // Predicated region
    $region46: #{tpu_custom_call.1} parent=1 // pred_check
      _
    $region47: #{tpu_custom_call.1} parent=1 // pred_check_branch
      %80 = sbr.rel (0) target = $region49
    $region48: #{tpu_custom_call.1} parent=1 // pred_region
      %81 = dma.done [#allocation9], 256
    $region49: #{tpu_custom_call.1} parent=1 // pred_fallthru
      _
    %82 = sfence
    %s83 = sld [smem:[#allocation2]]
    %v84 = vld [vmem:[%s5] sm:$0xf]
    %v85 = vld [vmem:[%s6] sm:$0xf]
    %v86 = vld [vmem:[%s7] sm:$0xf]
    %s87 = sld [smem:[#allocation3]]
    %s88 = smul.f32 %s87, %s87
    %s89 = sadd.f32 %s88, 1.0
    %v90 = vstv %s89
    %v91 = vrsqrt.pop %v90
    %v92 = vmul.f32 %v90, %v91
    %vm93 = vcmp.eq.f32.partialorder %v90, inf
    %v94 = vsel %vm93, %v90, %v92
    %vm95 = vcmp.eq.f32.partialorder %v90, 0.0
    %v96 = vand.u32 %v90, 2147483648
    %v97 = vsel %vm95, %v96, %v94
    %s98 = vtos %v97
    %v99 = vstv %s98
    %v100 = vrcp.pop %v99
    %s101 = vtos %v100
    %v102 = vld [vmem:[#allocation8] sm:$0xff]
    %vm103 = vcmask 261120
    %v104 = vsel %vm103, %v102, 0.0
    %v105 = vrot.slane %v104, 4
    %v106 = vadd.f32 %v104, %v105
    %v107 = vrot.slane %v106, 2
    %v108 = vadd.f32 %v106, %v107
    %v109 = vrot.slane %v108, 1
    %v110 = vadd.f32 %v108, %v109
    %v111 = vrcp.pop 8.0
    %v112 = vmul.f32 %v110, %v111
    %v113 = vld [vmem:[#allocation10] sm:$0xff]
    %v114 = vsel %vm103, %v113, 0.0
    %v115 = vrot.slane %v114, 4
    %v116 = vadd.f32 %v114, %v115
    %v117 = vrot.slane %v116, 2
    %v118 = vadd.f32 %v116, %v117
    %v119 = vrot.slane %v118, 1
    %v120 = vadd.f32 %v118, %v119
    %v121 = vmul.f32 %v120, %v111
    %v122 = vsub.f32 %v121, %v112
    %v123 = vstv %s83
    %v124 = vmul.f32 %v122, %v123
    %v125 = vadd.f32 %v112, %v124
    %v126 = vmul.f32 %v85, %v125
    %vm127 = vcmask 257024
    %v128 = vsel %vm127, %v126, 0.0
    %129 = vadd.xlane.f32.xlu0 %v128
    %v130 = vpop.xlane.xlu0 %129
    %v131 = vld [vmem:[#allocation7] sm:$0xff]
    %v132 = vstv %s101
    %v133 = vmul.f32 %v131, %v132
    %v135 = vcombine.high %v133, %v133
    %vm136 = vcmask 31744
    %v138 = vsel %vm136, %v84, 0
    %vm140 = vcmask 1043456
    %v141 = vsel %vm140, %v133, 0
    %v143 = vsel %vm140, %v135, 0
    %145 = vmatprep.subr.mxu0 0.0
    %146 = vmatpush1.msra.mxu0 0.0
    %147 = vmatprep.subr.mxu0 0.0
    %148 = vmatpush1.msra.mxu0 0.0
    %149 = vmatprep.subr.mxu0 0.0
    %150 = vmatpush1.msra.mxu0 0.0
    %151 = vmatprep.subr.mxu0 0.0
    %152 = vmatpush1.msra.mxu0 0.0
    %153 = vmatprep.subr.mxu0 0.0
    %154 = vmatpush1.msra.mxu0 0.0
    %155 = vmatprep.subr.mxu0 0.0
    %156 = vmatpush1.msra.mxu0 0.0
    %157 = vmatprep.subr.mxu0 0.0
    %158 = vmatpush1.msra.mxu0 0.0
    %159 = vmatprep.subr.mxu0 0.0
    %160 = vmatpush1.msra.mxu0 0.0
    %161 = vmatprep.subr.mxu0 0.0
    %162 = vmatpush1.msra.mxu0 0.0
    %163 = vmatprep.subr.mxu0 0.0
    %164 = vmatpush1.msra.mxu0 0.0
    %165 = vmatprep.subr.mxu0 0.0
    %166 = vmatpush1.msra.mxu0 0.0
    %167 = vmatprep.subr.mxu0 0.0
    %168 = vmatpush1.msra.mxu0 0.0
    %169 = vmatprep.subr.mxu0 0.0
    %170 = vmatpush1.msra.mxu0 0.0
    %171 = vmatprep.subr.mxu0 0.0
    %172 = vmatpush1.msra.mxu0 0.0
    %173 = vmatprep.subr.mxu0 0.0
    %174 = vmatpush1.msra.mxu0 0.0
    %175 = vmatprep.subr.mxu0 %v143
    %176 = vmatpush1.msra.mxu0 %v141
    %177 = vmatprep.subr.mxu0 0.0
    %178 = vmatpush2.msra.mxu0 0.0
    %179 = vmatprep.subr.mxu0 0.0
    %180 = vmatpush2.msra.mxu0 0.0
    %181 = vmatprep.subr.mxu0 0.0
    %182 = vmatpush2.msra.mxu0 0.0
    %183 = vmatprep.subr.mxu0 0.0
    %184 = vmatpush2.msra.mxu0 0.0
    %185 = vmatprep.subr.mxu0 0.0
    %186 = vmatpush2.msra.mxu0 0.0
    %187 = vmatprep.subr.mxu0 0.0
    %188 = vmatpush2.msra.mxu0 0.0
    %189 = vmatprep.subr.mxu0 0.0
    %190 = vmatpush2.msra.mxu0 0.0
    %191 = vmatprep.subr.mxu0 0.0
    %192 = vmatpush2.msra.mxu0 0.0
    %193 = vmatprep.subr.mxu0 0.0
    %194 = vmatpush2.msra.mxu0 0.0
    %195 = vmatprep.subr.mxu0 0.0
    %196 = vmatpush2.msra.mxu0 0.0
    %197 = vmatprep.subr.mxu0 0.0
    %198 = vmatpush2.msra.mxu0 0.0
    %199 = vmatprep.subr.mxu0 0.0
    %200 = vmatpush2.msra.mxu0 0.0
    %201 = vmatprep.subr.mxu0 0.0
    %202 = vmatpush2.msra.mxu0 0.0
    %203 = vmatprep.subr.mxu0 0.0
    %204 = vmatpush2.msra.mxu0 0.0
    %205 = vmatprep.subr.mxu0 0.0
    %206 = vmatpush2.msra.mxu0 0.0
    %207 = vmatprep.subr.mxu0 0.0
    %208 = vmatpush2.msra.mxu0 0.0
    %209 = vmatprep.mubr.f32.mxu0 0.0
    %210 = vmatmul.mubr.f32.gmra.mxu0 %v138
    %v211 = vpop.f32.mrf.mxu0
    %v212 = vadd.f32 0.0, %v211
    %v213 = vpop.f32.mrf.mxu0
    %v214 = vadd.f32 0.0, %v213
    %215 = vdwg.mxu0
    %v218 = vcombine.low %v212, %v214
    %v220 = vadd.f32 %v131, %v218
    %v223 = vunpack.c.l.s4 839922192
    %v224 = vunpack.c.0.s8 %v223
    %v225 = vlaneseq
    %v226 = vshrl.u32 %v225, 7
    %v227 = vsub.s32 %v224, %v226
    %v228 = vrot.slane %v130, %v227
    %v230 = vadd.f32 %v220, %v228
    %232 = vset.pattern.permute.xlu0 0
    %233 = vperm.xlu0 %232, %v86
    %v234 = vpop.permute.xlu0 %233
    %v236 = vunpack.c.l.s4 839922192
    %v237 = vunpack.c.0.s8 %v236
    %v238 = vlaneseq
    %v239 = vshrl.u32 %v238, 7
    %v240 = vsub.s32 %v237, %v239
    %v241 = vrot.slane %v234, %v240
    %v243 = vadd.f32 %v230, %v241
    %244 = vst [vmem:[#allocation11] sm:$0xff] %v243
    %s245 = sld [smem:[#allocation3 + $0x1]]
    %s246 = smul.f32 %s245, %s245
    %s247 = sadd.f32 %s246, 1.0
    %v248 = vstv %s247
    %v249 = vrsqrt.pop %v248
    %v250 = vmul.f32 %v248, %v249
    %vm251 = vcmp.eq.f32.partialorder %v248, inf
    %v252 = vsel %vm251, %v248, %v250
    %vm253 = vcmp.eq.f32.partialorder %v248, 0.0
    %v254 = vand.u32 %v248, 2147483648
    %v255 = vsel %vm253, %v254, %v252
    %s256 = vtos %v255
    %v257 = vstv %s256
    %v258 = vrcp.pop %v257
    %s259 = vtos %v258
    %s260 = scalar_lea.vmem [#allocation8], 8
    %v261 = vld [vmem:[%s260] sm:$0xff]
    %v262 = vsel %vm103, %v261, 0.0
    %v263 = vrot.slane %v262, 4
    %v264 = vadd.f32 %v262, %v263
    %v265 = vrot.slane %v264, 2
    %v266 = vadd.f32 %v264, %v265
    %v267 = vrot.slane %v266, 1
    %v268 = vadd.f32 %v266, %v267
    %v269 = vmul.f32 %v268, %v111
    %s270 = scalar_lea.vmem [#allocation10], 8
    %v271 = vld [vmem:[%s270] sm:$0xff]
    %v272 = vsel %vm103, %v271, 0.0
    %v273 = vrot.slane %v272, 4
    %v274 = vadd.f32 %v272, %v273
    %v275 = vrot.slane %v274, 2
    %v276 = vadd.f32 %v274, %v275
    %v277 = vrot.slane %v276, 1
    %v278 = vadd.f32 %v276, %v277
    %v279 = vmul.f32 %v278, %v111
    %v280 = vsub.f32 %v279, %v269
    %v281 = vmul.f32 %v280, %v123
    %v282 = vadd.f32 %v269, %v281
    %v283 = vmul.f32 %v85, %v282
    %v284 = vsel %vm127, %v283, 0.0
    %285 = vadd.xlane.f32.xlu0 %v284
    %v286 = vpop.xlane.xlu0 %285
    %s287 = scalar_lea.vmem [#allocation7], 8
    %v288 = vld [vmem:[%s287] sm:$0xff]
    %v289 = vstv %s259
    %v290 = vmul.f32 %v288, %v289
    %v292 = vcombine.high %v290, %v290
    %v293 = vsel %vm140, %v290, 0
    %v295 = vsel %vm140, %v292, 0
    %297 = vmatprep.subr.mxu0 0.0
    %298 = vmatpush1.msra.mxu0 0.0
    %299 = vmatprep.subr.mxu0 0.0
    %300 = vmatpush1.msra.mxu0 0.0
    %301 = vmatprep.subr.mxu0 0.0
    %302 = vmatpush1.msra.mxu0 0.0
    %303 = vmatprep.subr.mxu0 0.0
    %304 = vmatpush1.msra.mxu0 0.0
    %305 = vmatprep.subr.mxu0 0.0
    %306 = vmatpush1.msra.mxu0 0.0
    %307 = vmatprep.subr.mxu0 0.0
    %308 = vmatpush1.msra.mxu0 0.0
    %309 = vmatprep.subr.mxu0 0.0
    %310 = vmatpush1.msra.mxu0 0.0
    %311 = vmatprep.subr.mxu0 0.0
    %312 = vmatpush1.msra.mxu0 0.0
    %313 = vmatprep.subr.mxu0 0.0
    %314 = vmatpush1.msra.mxu0 0.0
    %315 = vmatprep.subr.mxu0 0.0
    %316 = vmatpush1.msra.mxu0 0.0
    %317 = vmatprep.subr.mxu0 0.0
    %318 = vmatpush1.msra.mxu0 0.0
    %319 = vmatprep.subr.mxu0 0.0
    %320 = vmatpush1.msra.mxu0 0.0
    %321 = vmatprep.subr.mxu0 0.0
    %322 = vmatpush1.msra.mxu0 0.0
    %323 = vmatprep.subr.mxu0 0.0
    %324 = vmatpush1.msra.mxu0 0.0
    %325 = vmatprep.subr.mxu0 0.0
    %326 = vmatpush1.msra.mxu0 0.0
    %327 = vmatprep.subr.mxu0 %v295
    %328 = vmatpush1.msra.mxu0 %v293
    %329 = vmatprep.subr.mxu0 0.0
    %330 = vmatpush2.msra.mxu0 0.0
    %331 = vmatprep.subr.mxu0 0.0
    %332 = vmatpush2.msra.mxu0 0.0
    %333 = vmatprep.subr.mxu0 0.0
    %334 = vmatpush2.msra.mxu0 0.0
    %335 = vmatprep.subr.mxu0 0.0
    %336 = vmatpush2.msra.mxu0 0.0
    %337 = vmatprep.subr.mxu0 0.0
    %338 = vmatpush2.msra.mxu0 0.0
    %339 = vmatprep.subr.mxu0 0.0
    %340 = vmatpush2.msra.mxu0 0.0
    %341 = vmatprep.subr.mxu0 0.0
    %342 = vmatpush2.msra.mxu0 0.0
    %343 = vmatprep.subr.mxu0 0.0
    %344 = vmatpush2.msra.mxu0 0.0
    %345 = vmatprep.subr.mxu0 0.0
    %346 = vmatpush2.msra.mxu0 0.0
    %347 = vmatprep.subr.mxu0 0.0
    %348 = vmatpush2.msra.mxu0 0.0
    %349 = vmatprep.subr.mxu0 0.0
    %350 = vmatpush2.msra.mxu0 0.0
    %351 = vmatprep.subr.mxu0 0.0
    %352 = vmatpush2.msra.mxu0 0.0
    %353 = vmatprep.subr.mxu0 0.0
    %354 = vmatpush2.msra.mxu0 0.0
    %355 = vmatprep.subr.mxu0 0.0
    %356 = vmatpush2.msra.mxu0 0.0
    %357 = vmatprep.subr.mxu0 0.0
    %358 = vmatpush2.msra.mxu0 0.0
    %359 = vmatprep.subr.mxu0 0.0
    %360 = vmatpush2.msra.mxu0 0.0
    %361 = vmatprep.mubr.f32.mxu0 0.0
    %362 = vmatmul.mubr.f32.gmra.mxu0 %v138
    %v363 = vpop.f32.mrf.mxu0
    %v364 = vadd.f32 0.0, %v363
    %v365 = vpop.f32.mrf.mxu0
    %v366 = vadd.f32 0.0, %v365
    %367 = vdwg.mxu0
    %v370 = vcombine.low %v364, %v366
    %v372 = vadd.f32 %v288, %v370
    %v375 = vunpack.c.l.s4 839922192
    %v376 = vunpack.c.0.s8 %v375
    %v377 = vlaneseq
    %v378 = vshrl.u32 %v377, 7
    %v379 = vsub.s32 %v376, %v378
    %v380 = vrot.slane %v286, %v379
    %v382 = vadd.f32 %v372, %v380
    %v383 = vadd.f32 %v382, %v241
    %s384 = scalar_lea.vmem [#allocation11], 8
    %385 = vst [vmem:[%s384] sm:$0xff] %v383
    // Predicated region
    $region50: #{tpu_custom_call.1} parent=1 // pred_check
      _
    $region51: #{tpu_custom_call.1} parent=1 // pred_check_branch
      %387 = sbr.rel (0) target = $region53
    $region52: #{tpu_custom_call.1} parent=1 // pred_region
      %s389 = ssub.s32 256, 256
      %390 = vsyncadd [#allocation5], %s389
      %s391 = sshll.u32 [#allocation11], 4
      %s392 = int_to_ptr.vmem [resolvable:$true] %s391
      %397 = dma.vmem_to_hbm [thread:$0]  %s392, 256, %s8, [#allocation5], 128, 128, 8
    $region53: #{tpu_custom_call.1} parent=1 // pred_fallthru
      _
    // Predicated region
    $region54: #{tpu_custom_call.1} parent=1 // pred_check
      _
    $region55: #{tpu_custom_call.1} parent=1 // pred_check_branch
      %399 = sbr.rel (0) target = $region57
    $region56: #{tpu_custom_call.1} parent=1 // pred_region
      %400 = dma.done [#allocation5], 256
    $region57: #{tpu_custom_call.1} parent=1 // pred_fallthru
      _
    %401 = vsyncpa [#allocation4], 1
    %402 = vsyncpa [#allocation9], 1
    %403 = vsyncpa [#allocation5], 1
    %404 = vsyncpa [#allocation6], 1

</llo_original>
